<compile_context>
chip_gen: v5e
topology: v5e:2x2
jax: 0.10.0
libtpu: 0.0.40
codegen_flags: <defaults>
</compile_context>

<pallas_src>
import jax
import jax.numpy as jnp
from jax.experimental import pallas as pl
from jax.experimental.pallas import tpu as pltpu

LANES = 128
SUBLANES = 8
MAX_BLOCK_ROWS = 2048           # (2048, 128) f32 = 1 MiB / block / buffer
SINGLE_BLOCK_MAX_ROWS = 1024    # <= 512 KiB -> one gridless block
MIN_GRID_STEPS = 4              # keep >= 4 grid steps (v7x 2 TCs + pipelining)
PALLAS_MIN_BYTES = 128 * 1024   # below this, plain jnp (dispatch-overhead bound)


def _round_up(a, m):
    return ((a + m - 1) // m) * m


def linear_fma_kernel(w_ref, b_ref, x_ref, o_ref):
    # w_ref, b_ref: (1, 1) SMEM scalars; x_ref, o_ref: lane-dense (rows, 128) VMEM.
    w = w_ref[0, 0]
    b = b_ref[0, 0]
    o_ref[...] = (x_ref[...] * w + b).astype(o_ref.dtype)  # pure VPU FMA


def layer_linear_regression(x, weight, bias, *, force_pallas=False):
    """x: (N, 1); weight: (1, 1); bias: (1,) -> (N, 1)."""
    n, in_f = x.shape
    out_f = weight.shape[0]
    assert in_f == 1 and out_f == 1, "nn.Linear(1, 1) forward"

    # Tiny-N fast path: a single fused elementwise op beats 3-4 dispatches
    # over a few hundred bytes of payload.
    if not force_pallas and n * x.dtype.itemsize < PALLAS_MIN_BYTES:
        return (x * weight.reshape(()) + bias.reshape(())).astype(x.dtype)

    w2d = weight.reshape(1, 1).astype(jnp.float32)
    b2d = bias.reshape(1, 1).astype(jnp.float32)

    # ---- lane-dense slab: (N, 1) -> (rows, 128), padding only if needed ----
    rows = pl.cdiv(n, LANES)
    n_pad = rows * LANES
    flat = x.reshape(-1)
    if n_pad != n:
        # < 128 pad elements; this pad (one extra HBM pass) only happens when
        # N is not lane-aligned.  When N % 128 == 0 the reshape is a free
        # bitcast and no wrapper copies occur at all.
        flat = jnp.pad(flat, (0, n_pad - n))
    slab = flat.reshape(rows, LANES)

    smem_spec = pl.BlockSpec(memory_space=pltpu.MemorySpace.SMEM)
    out_shape = jax.ShapeDtypeStruct((rows, LANES), slab.dtype)

    if rows <= SINGLE_BLOCK_MAX_ROWS:
        # Small/medium N: one gridless block (block shape == array shape).
        y_slab = pl.pallas_call(
            linear_fma_kernel,
            out_shape=out_shape,
            in_specs=[
                smem_spec,                                           # weight
                smem_spec,                                           # bias
                pl.BlockSpec(memory_space=pltpu.MemorySpace.VMEM),   # x slab
            ],
            out_specs=pl.BlockSpec(memory_space=pltpu.MemorySpace.VMEM),
            input_output_aliases={2: 0},   # donate the slab buffer
        )(w2d, b2d, slab)
    else:
        # Large N: tile rows with big blocks but keep >= MIN_GRID_STEPS steps
        # so the grid still pipelines / shards across cores.
        block_rows = min(
            MAX_BLOCK_ROWS,
            _round_up(pl.cdiv(rows, MIN_GRID_STEPS), SUBLANES),
        )
        grid = (pl.cdiv(rows, block_rows),)   # ragged edge block auto-masked
        y_slab = pl.pallas_call(
            linear_fma_kernel,
            out_shape=out_shape,
            grid=grid,
            in_specs=[
                smem_spec,                                           # weight
                smem_spec,                                           # bias
                pl.BlockSpec((block_rows, LANES), lambda i: (i, 0)),
            ],
            out_specs=pl.BlockSpec((block_rows, LANES), lambda i: (i, 0)),
            input_output_aliases={2: 0},   # donate the slab buffer
            compiler_params=pltpu.CompilerParams(
                dimension_semantics=("parallel",)
            ),
        )(w2d, b2d, slab)

    # Restore the (N, 1) view.  The slice only exists when N wasn't
    # lane-aligned (it is a single contiguous slice of the padded tail).
    y = y_slab.reshape(-1)
    if n_pad != n:
        y = y[:n]
    return y.reshape(n, 1)


if __name__ == "__main__":
    key = jax.random.PRNGKey(0)
    kx, kw, kb = jax.random.split(key, 3)

    # Matches the reference script: x = np.random.rand(100, 1)
    x = jax.random.uniform(kx, (100, 1), dtype=jnp.float32)

    # nn.Linear(1, 1) init: U(-1/sqrt(in_features), 1/sqrt(in_features)) = U(-1, 1)
    weight = jax.random.uniform(kw, (1, 1), dtype=jnp.float32, minval=-1.0, maxval=1.0)
    bias = jax.random.uniform(kb, (1,), dtype=jnp.float32, minval=-1.0, maxval=1.0)

    # Small N, forced through the gridless single-block Pallas path.
    y = jax.block_until_ready(
        layer_linear_regression(x, weight, bias, force_pallas=True))
    y_ref = x @ weight.T + bias
    assert y.shape == (100, 1)
    assert jnp.allclose(y, y_ref, atol=1e-6), "mismatch vs reference (small N)"

    # Mid N (not lane-aligned): natural single-block Pallas path.
    x_mid = jax.random.uniform(kx, (70000, 1), dtype=jnp.float32)
    y_mid = jax.block_until_ready(layer_linear_regression(x_mid, weight, bias))
    assert y_mid.shape == (70000, 1)
    assert jnp.allclose(y_mid, x_mid @ weight.T + bias, atol=1e-6), \
        "mismatch vs reference (mid N)"

    # Large N: tiled grid path (>= 4 steps) with a ragged edge block.
    x_big = jax.random.uniform(kx, (300000, 1), dtype=jnp.float32)
    y_big = jax.block_until_ready(layer_linear_regression(x_big, weight, bias))
    assert y_big.shape == (300000, 1)
    assert jnp.allclose(y_big, x_big @ weight.T + bias, atol=1e-6), \
        "mismatch vs reference (large N)"

    print("KERNEL_OK")
</pallas_src>

<mosaic_0001>
module attributes {stable_mosaic.version = 11 : i64} {
  func.func @linear_fma_kernel(%arg0: memref<1x1xf32, #tpu.memory_space<smem>>, %arg1: memref<1x1xf32, #tpu.memory_space<smem>>, %arg2: memref<1x128xf32, #tpu.memory_space<vmem>>, %arg3: memref<1x128xf32, #tpu.memory_space<vmem>>) attributes {dimension_semantics = [], scalar_prefetch = 0 : i64, scratch_operands = 0 : i64, tpu.core_type = #tpu.core_type<tc>} {
    %c0 = arith.constant 0 : index
    %c0_0 = arith.constant 0 : index
    %0 = memref.load %arg0[%c0, %c0_0] : memref<1x1xf32, #tpu.memory_space<smem>>
    %c0_1 = arith.constant 0 : index
    %c0_2 = arith.constant 0 : index
    %1 = memref.load %arg1[%c0_1, %c0_2] : memref<1x1xf32, #tpu.memory_space<smem>>
    %c0_3 = arith.constant 0 : index
    %c0_4 = arith.constant 0 : index
    %2 = vector.load %arg2[%c0_3, %c0_4] : memref<1x128xf32, #tpu.memory_space<vmem>>, vector<1x128xf32>
    %3 = vector.broadcast %0 : f32 to vector<1x128xf32>
    %4 = arith.mulf %2, %3 : vector<1x128xf32>
    %5 = vector.broadcast %1 : f32 to vector<1x128xf32>
    %6 = arith.addf %4, %5 : vector<1x128xf32>
    %c0_5 = arith.constant 0 : index
    %c0_6 = arith.constant 0 : index
    %7 = vector.load %arg3[%c0_5, %c0_6] : memref<1x128xf32, #tpu.memory_space<vmem>>, vector<1x128xf32>
    tpu.vector_store %arg3[%c0_5, %c0_6], %6 {strides = array<i32>} : memref<1x128xf32, #tpu.memory_space<vmem>>, vector<1x128xf32>,
    return
  }
}

</mosaic_0001>

<llo_original>
// kernel: tpu_custom_call.1
$region0: #{tpu_custom_call.1}
  #allocation0 [shape = 'u32[]', space=smem, size = 0x4, offset = 0x4, fixed_abs, tag = 'smem constant byte address 0x4 - core index']
  #allocation1 [shape = 'u32[72,128]{1,0:T(1,128)}', space=vmem, size = 0x9000, scoped, tag = 'internal scratch']
  #allocation2 [shape = 'f32[1,1]{1,0:T(1,128)S(6)}', space=smem, size = 0x200, scoped, tag = 'scoped memory for tpu_custom_call.1']
  #allocation3 [shape = 'f32[1,1]{1,0:T(1,128)S(6)}', space=smem, size = 0x200, scoped, tag = 'scoped memory for tpu_custom_call.1']
  %s0 = inlined_call_operand.<no memory space> [shape: f32[1,1], index: 0, kind: input, shape index: {}]
  %s1 = inlined_call_operand.<no memory space> [shape: f32[1,1], index: 1, kind: input, shape index: {}]
  %s2 = inlined_call_operand.hbm [shape: f32[1,128], index: 2, kind: input, shape index: {}, may-alias: {2,3}]
  %s3 = inlined_call_operand.hbm [shape: f32[1,128], index: 3, kind: output, shape index: {}, may-alias: {2,3}]
  %s4 = sld [smem:[#allocation0]]
  $region26: #{tpu_custom_call.1} parent=0
    _
  %s6 = ssub.s32 1, %s4
  %s7 = scalar_select 0, %s6, %s4
  %8 = sst [smem:[#allocation2]] %s0
  %9 = sst [smem:[#allocation3]] %s1
  $region1: #{tpu_custom_call.1} parent=0
    #allocation4 [shape = 'u8[512]{0}', space=vmem, size = 0x400, scoped, tag = 'input window, operand 2, single buffered']
    #allocation5 [shape = 's32[1]{0}', space=sflag, size = 0x4, scoped, tag = 'scoped memory for tpu_custom_call.1']
    #allocation6 [shape = 's32[1]{0}', space=sflag, size = 0x4, scoped, tag = 'scoped memory for tpu_custom_call.1']
    #allocation7 [shape = 'u8[512]{0}', space=vmem, size = 0x400, scoped, tag = 'output window, operand 0, single buffered']
    %10 = vsyncpa [#allocation5], 0
    %11 = vsyncpa [#allocation6], 0
    // Predicated region
    $region2: #{tpu_custom_call.1} parent=1 // pred_check
      _
    $region3: #{tpu_custom_call.1} parent=1 // pred_check_branch
      %13 = sbr.rel (0) target = $region5
    $region4: #{tpu_custom_call.1} parent=1 // pred_region
      _
    $region5: #{tpu_custom_call.1} parent=1 // pred_fallthru
      _
    // Predicated region
    $region6: #{tpu_custom_call.1} parent=1 // pred_check
      _
    $region7: #{tpu_custom_call.1} parent=1 // pred_check_branch
      %15 = sbr.rel (0) target = $region9
    $region8: #{tpu_custom_call.1} parent=1 // pred_region
      _
    $region9: #{tpu_custom_call.1} parent=1 // pred_fallthru
      _
    // Predicated region
    $region10: #{tpu_custom_call.1} parent=1 // pred_check
      _
    $region11: #{tpu_custom_call.1} parent=1 // pred_check_branch
      %17 = sbr.rel (0) target = $region13
    $region12: #{tpu_custom_call.1} parent=1 // pred_region
      %19 = vsyncadd [#allocation5], 0
      %s21 = sshll.u32 %s2, 4
      %s22 = int_to_ptr.hbm [resolvable:$true] %s21
      %s23 = sshll.u32 [#allocation4], 4
      %s24 = int_to_ptr.vmem [resolvable:$true] %s23
      %26 = dma.hbm_to_vmem [thread:$0]  %s22, 16, %s24, [#allocation5]
    $region13: #{tpu_custom_call.1} parent=1 // pred_fallthru
      _
    // Predicated region
    $region14: #{tpu_custom_call.1} parent=1 // pred_check
      _
    $region15: #{tpu_custom_call.1} parent=1 // pred_check_branch
      %28 = sbr.rel (0) target = $region17
    $region16: #{tpu_custom_call.1} parent=1 // pred_region
      %30 = dma.done [#allocation5], 16
    $region17: #{tpu_custom_call.1} parent=1 // pred_fallthru
      _
    %s31 = sld [smem:[#allocation2]]
    %s32 = sld [smem:[#allocation3]]
    %v33 = vld [vmem:[#allocation4] sm:$0x1]
    %v34 = vstv %s31
    %v35 = vmul.f32 %v33, %v34
    %v36 = vstv %s32
    %v37 = vadd.f32 %v35, %v36
    %38 = vst [vmem:[#allocation7] sm:$0x1] %v37
    // Predicated region
    $region18: #{tpu_custom_call.1} parent=1 // pred_check
      _
    $region19: #{tpu_custom_call.1} parent=1 // pred_check_branch
      %40 = sbr.rel (0) target = $region21
    $region20: #{tpu_custom_call.1} parent=1 // pred_region
      %42 = vsyncadd [#allocation6], 0
      %s44 = sshll.u32 [#allocation7], 4
      %s45 = int_to_ptr.vmem [resolvable:$true] %s44
      %s46 = sshll.u32 %s3, 4
      %s47 = int_to_ptr.hbm [resolvable:$true] %s46
      %49 = dma.vmem_to_hbm [thread:$0]  %s45, 16, %s47, [#allocation6]
    $region21: #{tpu_custom_call.1} parent=1 // pred_fallthru
      _
    // Predicated region
    $region22: #{tpu_custom_call.1} parent=1 // pred_check
      _
    $region23: #{tpu_custom_call.1} parent=1 // pred_check_branch
      %51 = sbr.rel (0) target = $region25
    $region24: #{tpu_custom_call.1} parent=1 // pred_region
      %53 = dma.done [#allocation6], 16
    $region25: #{tpu_custom_call.1} parent=1 // pred_fallthru
      _
    %54 = vsyncpa [#allocation5], 1
    %55 = vsyncpa [#allocation6], 1

</llo_original>
